<compile_context>
chip_gen: v7x
topology: tpu7x:2x2x1
jax: 0.10.0
libtpu: 0.0.40
codegen_flags: <defaults>
</compile_context>

<pallas_src>
import functools

import jax
import jax.numpy as jnp
from jax import lax
from jax.experimental import pallas as pl
from jax.experimental.pallas import tpu as pltpu


def _time_decay_loss_kernel(pred_ref, tgt_ref, out_ref, *, H, W, TB,
                            temperature):
    """One grid step == TB batch elements; emits one partial-loss scalar."""
    S = pred_ref.shape[1]
    C = 2 * H + 2 * W
    L = TB * C
    NSEG = 4 * TB
    f32 = jnp.float32

    # Band-invariant class-index pattern: [0..H-1, 0..H-1, 0..W-1, 0..W-1].
    iota_h = lax.broadcasted_iota(jnp.int32, (S, H), 1)
    iota_w = lax.broadcasted_iota(jnp.int32, (S, W), 1)
    class_band = jnp.concatenate([iota_h, iota_h, iota_w, iota_w], axis=1)
    class_slab = jnp.concatenate([class_band] * TB, axis=1)          # (S, L)

    # ---- Pass 1: per-batch target fields, then one batched exp --------------
    t_cols, idxh_cols, idxw_cols, p_cols = [], [], [], []
    for b in range(TB):                                  # static unroll, small
        tgt_b = tgt_ref[b].astype(f32)                   # (S, 4)
        t_time = tgt_b[:, 0:1]                           # (S, 1) event times
        t_cols.append(t_time - jnp.mean(t_time))         # center for exp range
        idxh_cols.append(tgt_b[:, 1:2].astype(jnp.int32))  # .long() truncation
        idxw_cols.append(tgt_b[:, 2:3].astype(jnp.int32))
        p_cols.append(tgt_b[:, 3:4])                     # (S, 1)

    # TODO(synk): the e_pos/e_neg factorization over/underflows f32 once the
    # centered time span exceeds ~88*temperature; for very long sequences or
    # wide time ranges switch to a block-segmented recurrence / re-centering.
    tc = jnp.concatenate(t_cols, axis=1) * (1.0 / temperature)       # (S, TB)
    e_all = jnp.exp(jnp.concatenate([-tc, tc], axis=1))              # (S, 2TB)

    # ---- Build the wide lane-stacked slabs (broadcast + concat, no masked
    #      sub-128-lane stores, no VMEM scratch) ------------------------------
    idx_bands, aw_bands, epos_bands, wseg_cols = [], [], [], []
    for b in range(TB):
        p = p_cols[b]
        q = 1.0 - p
        e_neg = e_all[:, b:b + 1]                        # (S, 1)
        e_pos = e_all[:, TB + b:TB + b + 1]              # (S, 1)
        wq = q * e_neg
        wp = p * e_neg
        idx_bands.append(jnp.concatenate(
            [jnp.broadcast_to(idxh_cols[b], (S, 2 * H)),
             jnp.broadcast_to(idxw_cols[b], (S, 2 * W))], axis=1))
        aw_bands.append(jnp.concatenate(
            [jnp.broadcast_to(wq, (S, H)), jnp.broadcast_to(wp, (S, H)),
             jnp.broadcast_to(wq, (S, W)), jnp.broadcast_to(wp, (S, W))],
            axis=1))
        epos_bands.append(jnp.broadcast_to(e_pos, (S, C)))
        wseg_cols.append(jnp.concatenate([q, p, q, p], axis=1))      # (S, 4)

    idx_slab = jnp.concatenate(idx_bands, axis=1)        # (S, L) int32
    aw_slab = jnp.concatenate(aw_bands, axis=1)          # (S, L) weight*e_neg
    epos_slab = jnp.concatenate(epos_bands, axis=1)      # (S, L)
    wseg = jnp.concatenate(wseg_cols, axis=1)            # (S, NSEG) CE weights

    # torch.scatter(zeros, 2, idx, val) == one_hot(idx) * val, full-width.
    A = jnp.where(class_slab == idx_slab, aw_slab, 0.0)  # (S, L)

    # ---- Backward time-decay propagation == suffix sum along S --------------
    #   T'[j] = e_pos[j] * sum_{k >= j} (T[k] * e_neg[k])   for rows j >= 1,
    #   row 0 is never updated by the reference loop.
    P = A
    d = 1
    while d < S:                                         # log2(S) slab adds
        shifted = jnp.concatenate(
            [P[d:, :], jnp.zeros((d, L), f32)], axis=0)
        P = P + shifted
        d *= 2
    row0 = lax.broadcasted_iota(jnp.int32, (S, L), 0) == 0
    P = jnp.where(row0, A, P)
    decayed = P * epos_slab                              # (S, L) target logits

    # ---- Pass 2: soft cross-entropy, full-width ------------------------------
    pred_slab = jnp.concatenate(
        [pred_ref[b].astype(f32) for b in range(TB)], axis=1)         # (S, L)

    seg_bounds = []
    for b in range(TB):
        o = b * C
        seg_bounds += [(o, o + H), (o + H, o + 2 * H),
                       (o + 2 * H, o + 2 * H + W), (o + 2 * H + W, o + C)]

    # Per-segment maxes: narrow XLU lane-reduces (separate slot); everything
    # expensive (exp, mul) stays on the wide slabs below.
    mt_bands, mp_bands, mp_cols = [], [], []
    for lo, hi in seg_bounds:
        mt = jnp.max(decayed[:, lo:hi], axis=1, keepdims=True)        # (S, 1)
        mp = jnp.max(pred_slab[:, lo:hi], axis=1, keepdims=True)
        mt_bands.append(jnp.broadcast_to(mt, (S, hi - lo)))
        mp_bands.append(jnp.broadcast_to(mp, (S, hi - lo)))
        mp_cols.append(mp)
    mt_slab = jnp.concatenate(mt_bands, axis=1)           # (S, L)
    mp_slab = jnp.concatenate(mp_bands, axis=1)           # (S, L)
    mp_compact = jnp.concatenate(mp_cols, axis=1)         # (S, NSEG)

    te = jnp.exp(decayed - mt_slab)                       # one wide EUP pass
    ep = jnp.exp(pred_slab - mp_slab)                     # one wide EUP pass
    tep = te * pred_slab                                  # one wide VPU pass

    # Per-segment sums via small MXU matmuls against a 0/1 indicator matrix.
    g_blocks = []
    for k, (lo, hi) in enumerate(seg_bounds):
        g_blocks.append(
            (lax.broadcasted_iota(jnp.int32, (hi - lo, NSEG), 1) == k)
            .astype(f32))
    Gmat = jnp.concatenate(g_blocks, axis=0)              # (L, NSEG)

    z_ep = jnp.dot(ep, Gmat, preferred_element_type=f32)  # (S, NSEG)
    z_te = jnp.dot(te, Gmat, preferred_element_type=f32)
    n_tep = jnp.dot(tep, Gmat, preferred_element_type=f32)

    # -sum_c softmax(tgt)_c * log_softmax(pred)_c
    #   = lse(pred) - (sum_c e^(tgt-mt) * pred_c) / (sum_c e^(tgt-mt))
    ce = (jnp.log(z_ep) + mp_compact) - n_tep / z_te      # (S, NSEG)

    # Weighted reduce over segments + sequence (XLU), one scalar per step.
    tot = jnp.sum(wseg * ce, axis=1, keepdims=True)       # (S, 1)
    out_ref[0, :, :] = jnp.sum(tot, axis=0, keepdims=True)  # (1, 1)


def _device_info():
    """Best-effort TPU-generation detection for tiling / VMEM decisions."""
    kind = ""
    try:
        kind = (getattr(jax.devices()[0], "device_kind", "") or "").lower()
    except Exception:
        pass
    if "v5 lite" in kind or "v5e" in kind or "v5lite" in kind:
        # 1 TensorCore, 128 MiB physical VMEM, lowest HBM BW: favour big blocks.
        return dict(cores=1, block_budget=12 << 20, vmem_limit=64 << 20)
    if "v6" in kind:
        # 1 TensorCore, 128 MiB physical VMEM.
        return dict(cores=1, block_budget=24 << 20, vmem_limit=96 << 20)
    if "v7" in kind or "7x" in kind:
        # 2 TensorCores, only 64 MiB physical VMEM: smaller blocks, even grid.
        return dict(cores=2, block_budget=10 << 20, vmem_limit=48 << 20)
    # Unknown generation: conservative defaults.
    return dict(cores=2, block_budget=8 << 20, vmem_limit=None)


def _pick_block_b(B, S, C, *, cores, block_budget):
    """Largest batch tile whose per-step VMEM footprint fits the budget.

    Counts the double-buffered pred block, the lane-padded target block and
    ~a dozen live (S, TB*C) f32 working slabs.  On 2-TensorCore parts (v7x)
    prefers an even number of grid steps so dimension_semantics=("parallel",)
    splits work evenly; on single-core parts only keeps >=2 steps for
    DMA/compute overlap when possible.
    """
    def bytes_needed(tb):
        pred_blk = 2 * tb * S * C * 4          # double-buffered pred block
        tgt_blk = 2 * tb * S * 128 * 4         # (S, 4) lane-pads to 128 lanes
        live = 12 * tb * S * C * 4             # wide f32 working slabs
        return pred_blk + tgt_blk + live

    divisors = [d for d in range(1, B + 1) if B % d == 0]
    fitting = [tb for tb in divisors if bytes_needed(tb) <= block_budget] or [1]
    if cores > 1:
        pref = [tb for tb in fitting
                if (B // tb) >= cores and (B // tb) % cores == 0]
    else:
        pref = [tb for tb in fitting if (B // tb) >= 2]
    return max(pref) if pref else max(fitting)


def time_decay_loss(pred, target, *, H, W, temperature=256.0, block_b=None):
    B, S, C = pred.shape
    assert C == 2 * H + 2 * W, "pred last dim must be 2*H + 2*W"
    T4 = target.shape[-1]

    info = _device_info()
    if block_b is None:
        block_b = _pick_block_b(B, S, C, cores=info["cores"],
                                block_budget=info["block_budget"])
    assert B % block_b == 0
    G = B // block_b

    kernel = functools.partial(
        _time_decay_loss_kernel, H=H, W=W, TB=block_b,
        temperature=float(temperature))

    cp_kwargs = dict(dimension_semantics=("parallel",))
    if info["vmem_limit"] is not None:
        cp_kwargs["vmem_limit_bytes"] = int(info["vmem_limit"])

    partial_sums = pl.pallas_call(
        kernel,
        out_shape=jax.ShapeDtypeStruct((G, 1, 1), jnp.float32),
        grid_spec=pltpu.PrefetchScalarGridSpec(
            num_scalar_prefetch=0,
            grid=(G,),
            in_specs=[
                pl.BlockSpec((block_b, S, C), lambda g: (g, 0, 0)),
                pl.BlockSpec((block_b, S, T4), lambda g: (g, 0, 0)),
            ],
            out_specs=pl.BlockSpec((1, 1, 1), lambda g: (g, 0, 0)),
        ),
        compiler_params=pltpu.CompilerParams(**cp_kwargs),
    )(pred, target)

    return jnp.sum(partial_sums) / (B * S)


def _reference_loss(pred, target, *, H, W, temperature=256.0):
    # Pure-JAX transcription of the PyTorch forward (explicit backward loop),
    # used only as a correctness check.
    B, S, _ = pred.shape
    p_h0 = pred[:, :, :H]
    p_h1 = pred[:, :, H:2 * H]
    p_w0 = pred[:, :, 2 * H:2 * H + W]
    p_w1 = pred[:, :, 2 * H + W:]
    idx_h = target[:, :, 1].astype(jnp.int32)
    idx_w = target[:, :, 2].astype(jnp.int32)
    p = target[:, :, 3:4]
    oh_h = jax.nn.one_hot(idx_h, H, dtype=pred.dtype)
    oh_w = jax.nn.one_hot(idx_w, W, dtype=pred.dtype)
    t_h0 = oh_h * (1 - p)
    t_h1 = oh_h * p
    t_w0 = oh_w * (1 - p)
    t_w1 = oh_w * p
    diff = target[:, 1:, 0] - target[:, :-1, 0]
    dec = jnp.exp(-diff / temperature)[..., None]          # (B, S-1, 1)
    for i in range(S - 1, 1, -1):
        t_h0 = t_h0.at[:, i - 1].add(t_h0[:, i] * dec[:, i - 1])
        t_h1 = t_h1.at[:, i - 1].add(t_h1[:, i] * dec[:, i - 1])
        t_w0 = t_w0.at[:, i - 1].add(t_w0[:, i] * dec[:, i - 1])
        t_w1 = t_w1.at[:, i - 1].add(t_w1[:, i] * dec[:, i - 1])

    def ce(logits, t):
        tsm = jax.nn.softmax(t, axis=-1)
        logp = jax.nn.log_softmax(logits, axis=-1)
        return -(tsm * logp).sum(-1)                       # (B, S)

    l_h0 = ce(p_h0, t_h0)
    l_h1 = ce(p_h1, t_h1)
    l_w0 = ce(p_w0, t_w0)
    l_w1 = ce(p_w1, t_w1)
    t1 = target[:, :, 3]
    t0 = 1 - t1
    return (l_h0 * t0 + l_w0 * t0 + l_h1 * t1 + l_w1 * t1).mean()


if __name__ == "__main__":
    # B=4 so the batch-tiled path (TB=2 -> 128-lane slabs, grid=(2,)) is
    # exercised on every generation.
    B, S, H, W = 4, 8, 16, 16
    C = 2 * H + 2 * W
    TEMPERATURE = 256.0

    key = jax.random.PRNGKey(0)
    k1, k2, k3, k4, k5 = jax.random.split(key, 5)
    pred = jax.random.normal(k1, (B, S, C), dtype=jnp.float32)
    dt = jax.random.uniform(k2, (B, S), minval=1.0, maxval=60.0)
    times = jnp.cumsum(dt, axis=1)                         # increasing stamps
    idx_h = jax.random.randint(k3, (B, S), 0, H).astype(jnp.float32)
    idx_w = jax.random.randint(k4, (B, S), 0, W).astype(jnp.float32)
    prob = jax.random.uniform(k5, (B, S), dtype=jnp.float32)
    target = jnp.stack([times, idx_h, idx_w, prob], axis=-1)  # (B, S, 4)

    loss_fn = jax.jit(functools.partial(
        time_decay_loss, H=H, W=W, temperature=TEMPERATURE))
    loss = loss_fn(pred, target)
    jax.block_until_ready(loss)

    ref = _reference_loss(pred, target, H=H, W=W, temperature=TEMPERATURE)
    assert jnp.allclose(loss, ref, rtol=2e-4, atol=2e-4), (loss, ref)
    print("KERNEL_OK")
</pallas_src>

<mosaic_0001>
module attributes {stable_mosaic.version = 11 : i64} {
  func.func @_time_decay_loss_kernel(%arg0: i32, %arg1: memref<2x8x64xf32, #tpu.memory_space<vmem>>, %arg2: memref<2x8x4xf32, #tpu.memory_space<vmem>>, %arg3: memref<1x1x1xf32, #tpu.memory_space<vmem>>) attributes {dimension_semantics = [#tpu.dimension_semantics<parallel>], iteration_bounds = array<i64: 2>, scalar_prefetch = 0 : i64, scratch_operands = 0 : i64, tpu.core_type = #tpu.core_type<tc>, window_params = [{transform_indices = @transform_0, window_bounds = array<i64: 2, 8, 64>}, {transform_indices = @transform_1, window_bounds = array<i64: 2, 8, 4>}, {transform_indices = @transform_2, window_bounds = array<i64: 1, 1, 1>}]} {
    %0 = tpu.iota {dimensions = array<i32: 1>} : vector<8x16xi32>
    %1 = tpu.iota {dimensions = array<i32: 1>} : vector<8x16xi32>
    %2 = tpu.concatenate %0, %0, %1, %1 in 1 : vector<8x16xi32>, vector<8x16xi32>, vector<8x16xi32>, vector<8x16xi32> -> vector<8x64xi32>
    %3 = tpu.concatenate %2, %2 in 1 : vector<8x64xi32>, vector<8x64xi32> -> vector<8x128xi32>
    %c0 = arith.constant 0 : index
    %c0_0 = arith.constant 0 : index
    %c0_1 = arith.constant 0 : index
    %4 = vector.load %arg2[%c0, %c0_0, %c0_1] : memref<2x8x4xf32, #tpu.memory_space<vmem>>, vector<1x8x4xf32>
    %5 = vector.shape_cast %4 : vector<1x8x4xf32> to vector<8x4xf32>
    %6 = vector.extract_strided_slice %5 {offsets = [0, 0], sizes = [8, 1], strides = [1, 1]} : vector<8x4xf32> to vector<8x1xf32>
    %7 = vector.shape_cast %6 : vector<8x1xf32> to vector<1x8x1xf32>
    %cst = arith.constant dense<0.000000e+00> : vector<1xf32>
    %8 = vector.multi_reduction <add>, %7, %cst [1, 2] : vector<1x8x1xf32> to vector<1xf32>
    %9 = vector.shape_cast %8 : vector<1xf32> to vector<1x1x1xf32>
    %10 = vector.extract %9[0, 0, 0] : f32 from vector<1x1x1xf32>
    %cst_2 = arith.constant 8.000000e+00 : f32
    %11 = arith.divf %10, %cst_2 : f32
    %12 = vector.broadcast %11 : f32 to vector<8x1xf32>
    %13 = arith.subf %6, %12 : vector<8x1xf32>
    %14 = vector.extract_strided_slice %5 {offsets = [0, 1], sizes = [8, 1], strides = [1, 1]} : vector<8x4xf32> to vector<8x1xf32>
    %15 = arith.fptosi %14 : vector<8x1xf32> to vector<8x1xi32>
    %16 = vector.extract_strided_slice %5 {offsets = [0, 2], sizes = [8, 1], strides = [1, 1]} : vector<8x4xf32> to vector<8x1xf32>
    %17 = arith.fptosi %16 : vector<8x1xf32> to vector<8x1xi32>
    %18 = vector.extract_strided_slice %5 {offsets = [0, 3], sizes = [8, 1], strides = [1, 1]} : vector<8x4xf32> to vector<8x1xf32>
    %c1 = arith.constant 1 : index
    %c0_3 = arith.constant 0 : index
    %c0_4 = arith.constant 0 : index
    %19 = vector.load %arg2[%c1, %c0_3, %c0_4] : memref<2x8x4xf32, #tpu.memory_space<vmem>>, vector<1x8x4xf32>
    %20 = vector.shape_cast %19 : vector<1x8x4xf32> to vector<8x4xf32>
    %21 = vector.extract_strided_slice %20 {offsets = [0, 0], sizes = [8, 1], strides = [1, 1]} : vector<8x4xf32> to vector<8x1xf32>
    %22 = vector.shape_cast %21 : vector<8x1xf32> to vector<1x8x1xf32>
    %cst_5 = arith.constant dense<0.000000e+00> : vector<1xf32>
    %23 = vector.multi_reduction <add>, %22, %cst_5 [1, 2] : vector<1x8x1xf32> to vector<1xf32>
    %24 = vector.shape_cast %23 : vector<1xf32> to vector<1x1x1xf32>
    %25 = vector.extract %24[0, 0, 0] : f32 from vector<1x1x1xf32>
    %cst_6 = arith.constant 8.000000e+00 : f32
    %26 = arith.divf %25, %cst_6 : f32
    %27 = vector.broadcast %26 : f32 to vector<8x1xf32>
    %28 = arith.subf %21, %27 : vector<8x1xf32>
    %29 = vector.extract_strided_slice %20 {offsets = [0, 1], sizes = [8, 1], strides = [1, 1]} : vector<8x4xf32> to vector<8x1xf32>
    %30 = arith.fptosi %29 : vector<8x1xf32> to vector<8x1xi32>
    %31 = vector.extract_strided_slice %20 {offsets = [0, 2], sizes = [8, 1], strides = [1, 1]} : vector<8x4xf32> to vector<8x1xf32>
    %32 = arith.fptosi %31 : vector<8x1xf32> to vector<8x1xi32>
    %33 = vector.extract_strided_slice %20 {offsets = [0, 3], sizes = [8, 1], strides = [1, 1]} : vector<8x4xf32> to vector<8x1xf32>
    %34 = tpu.concatenate %13, %28 in 1 : vector<8x1xf32>, vector<8x1xf32> -> vector<8x2xf32>
    %cst_7 = arith.constant 3.906250e-03 : f32
    %35 = vector.broadcast %cst_7 : f32 to vector<8x2xf32>
    %36 = arith.mulf %34, %35 : vector<8x2xf32>
    %cst_8 = arith.constant 0.000000e+00 : f32
    %37 = vector.broadcast %cst_8 : f32 to vector<8x2xf32>
    %38 = arith.subf %37, %36 : vector<8x2xf32>
    %39 = tpu.concatenate %38, %36 in 1 : vector<8x2xf32>, vector<8x2xf32> -> vector<8x4xf32>
    %40 = math.exp %39 : vector<8x4xf32>
    %cst_9 = arith.constant 1.000000e+00 : f32
    %41 = vector.broadcast %cst_9 : f32 to vector<8x1xf32>
    %42 = arith.subf %41, %18 : vector<8x1xf32>
    %43 = vector.extract_strided_slice %40 {offsets = [0, 0], sizes = [8, 1], strides = [1, 1]} : vector<8x4xf32> to vector<8x1xf32>
    %44 = vector.extract_strided_slice %40 {offsets = [0, 2], sizes = [8, 1], strides = [1, 1]} : vector<8x4xf32> to vector<8x1xf32>
    %45 = arith.mulf %42, %43 : vector<8x1xf32>
    %46 = arith.mulf %18, %43 : vector<8x1xf32>
    %47 = vector.shape_cast %15 : vector<8x1xi32> to vector<8x1xi32>
    %48 = vector.broadcast %47 : vector<8x1xi32> to vector<8x32xi32>
    %49 = vector.shape_cast %17 : vector<8x1xi32> to vector<8x1xi32>
    %50 = vector.broadcast %49 : vector<8x1xi32> to vector<8x32xi32>
    %51 = tpu.concatenate %48, %50 in 1 : vector<8x32xi32>, vector<8x32xi32> -> vector<8x64xi32>
    %52 = vector.shape_cast %45 : vector<8x1xf32> to vector<8x1xf32>
    %53 = vector.broadcast %52 : vector<8x1xf32> to vector<8x16xf32>
    %54 = vector.shape_cast %46 : vector<8x1xf32> to vector<8x1xf32>
    %55 = vector.broadcast %54 : vector<8x1xf32> to vector<8x16xf32>
    %56 = vector.shape_cast %45 : vector<8x1xf32> to vector<8x1xf32>
    %57 = vector.broadcast %56 : vector<8x1xf32> to vector<8x16xf32>
    %58 = vector.shape_cast %46 : vector<8x1xf32> to vector<8x1xf32>
    %59 = vector.broadcast %58 : vector<8x1xf32> to vector<8x16xf32>
    %60 = tpu.concatenate %53, %55, %57, %59 in 1 : vector<8x16xf32>, vector<8x16xf32>, vector<8x16xf32>, vector<8x16xf32> -> vector<8x64xf32>
    %61 = vector.shape_cast %44 : vector<8x1xf32> to vector<8x1xf32>
    %62 = vector.broadcast %61 : vector<8x1xf32> to vector<8x64xf32>
    %63 = tpu.concatenate %42, %18, %42, %18 in 1 : vector<8x1xf32>, vector<8x1xf32>, vector<8x1xf32>, vector<8x1xf32> -> vector<8x4xf32>
    %cst_10 = arith.constant 1.000000e+00 : f32
    %64 = vector.broadcast %cst_10 : f32 to vector<8x1xf32>
    %65 = arith.subf %64, %33 : vector<8x1xf32>
    %66 = vector.extract_strided_slice %40 {offsets = [0, 1], sizes = [8, 1], strides = [1, 1]} : vector<8x4xf32> to vector<8x1xf32>
    %67 = vector.extract_strided_slice %40 {offsets = [0, 3], sizes = [8, 1], strides = [1, 1]} : vector<8x4xf32> to vector<8x1xf32>
    %68 = arith.mulf %65, %66 : vector<8x1xf32>
    %69 = arith.mulf %33, %66 : vector<8x1xf32>
    %70 = vector.shape_cast %30 : vector<8x1xi32> to vector<8x1xi32>
    %71 = vector.broadcast %70 : vector<8x1xi32> to vector<8x32xi32>
    %72 = vector.shape_cast %32 : vector<8x1xi32> to vector<8x1xi32>
    %73 = vector.broadcast %72 : vector<8x1xi32> to vector<8x32xi32>
    %74 = tpu.concatenate %71, %73 in 1 : vector<8x32xi32>, vector<8x32xi32> -> vector<8x64xi32>
    %75 = vector.shape_cast %68 : vector<8x1xf32> to vector<8x1xf32>
    %76 = vector.broadcast %75 : vector<8x1xf32> to vector<8x16xf32>
    %77 = vector.shape_cast %69 : vector<8x1xf32> to vector<8x1xf32>
    %78 = vector.broadcast %77 : vector<8x1xf32> to vector<8x16xf32>
    %79 = vector.shape_cast %68 : vector<8x1xf32> to vector<8x1xf32>
    %80 = vector.broadcast %79 : vector<8x1xf32> to vector<8x16xf32>
    %81 = vector.shape_cast %69 : vector<8x1xf32> to vector<8x1xf32>
    %82 = vector.broadcast %81 : vector<8x1xf32> to vector<8x16xf32>
    %83 = tpu.concatenate %76, %78, %80, %82 in 1 : vector<8x16xf32>, vector<8x16xf32>, vector<8x16xf32>, vector<8x16xf32> -> vector<8x64xf32>
    %84 = vector.shape_cast %67 : vector<8x1xf32> to vector<8x1xf32>
    %85 = vector.broadcast %84 : vector<8x1xf32> to vector<8x64xf32>
    %86 = tpu.concatenate %65, %33, %65, %33 in 1 : vector<8x1xf32>, vector<8x1xf32>, vector<8x1xf32>, vector<8x1xf32> -> vector<8x4xf32>
    %87 = tpu.concatenate %51, %74 in 1 : vector<8x64xi32>, vector<8x64xi32> -> vector<8x128xi32>
    %88 = tpu.concatenate %60, %83 in 1 : vector<8x64xf32>, vector<8x64xf32> -> vector<8x128xf32>
    %89 = tpu.concatenate %62, %85 in 1 : vector<8x64xf32>, vector<8x64xf32> -> vector<8x128xf32>
    %90 = tpu.concatenate %63, %86 in 1 : vector<8x4xf32>, vector<8x4xf32> -> vector<8x8xf32>
    %91 = arith.cmpi eq, %3, %87 : vector<8x128xi32>
    %cst_11 = arith.constant 0.000000e+00 : f32
    %92 = vector.broadcast %cst_11 : f32 to vector<8x128xf32>
    %93 = arith.select %91, %88, %92 : vector<8x128xi1>, vector<8x128xf32>
    %94 = vector.extract_strided_slice %93 {offsets = [1, 0], sizes = [7, 128], strides = [1, 1]} : vector<8x128xf32> to vector<7x128xf32>
    %cst_12 = arith.constant 0.000000e+00 : f32
    %95 = vector.broadcast %cst_12 : f32 to vector<1x128xf32>
    %96 = tpu.concatenate %94, %95 in 0 : vector<7x128xf32>, vector<1x128xf32> -> vector<8x128xf32>
    %97 = arith.addf %93, %96 : vector<8x128xf32>
    %98 = vector.extract_strided_slice %97 {offsets = [2, 0], sizes = [6, 128], strides = [1, 1]} : vector<8x128xf32> to vector<6x128xf32>
    %cst_13 = arith.constant 0.000000e+00 : f32
    %99 = vector.broadcast %cst_13 : f32 to vector<2x128xf32>
    %100 = tpu.concatenate %98, %99 in 0 : vector<6x128xf32>, vector<2x128xf32> -> vector<8x128xf32>
    %101 = arith.addf %97, %100 : vector<8x128xf32>
    %102 = vector.extract_strided_slice %101 {offsets = [4, 0], sizes = [4, 128], strides = [1, 1]} : vector<8x128xf32> to vector<4x128xf32>
    %cst_14 = arith.constant 0.000000e+00 : f32
    %103 = vector.broadcast %cst_14 : f32 to vector<4x128xf32>
    %104 = tpu.concatenate %102, %103 in 0 : vector<4x128xf32>, vector<4x128xf32> -> vector<8x128xf32>
    %105 = arith.addf %101, %104 : vector<8x128xf32>
    %106 = tpu.iota {dimensions = array<i32: 0>} : vector<8x128xi32>
    %c0_i32 = arith.constant 0 : i32
    %107 = vector.broadcast %c0_i32 : i32 to vector<8x128xi32>
    %108 = arith.cmpi eq, %106, %107 : vector<8x128xi32>
    %109 = arith.select %108, %93, %105 : vector<8x128xi1>, vector<8x128xf32>
    %110 = arith.mulf %109, %89 : vector<8x128xf32>
    %c0_15 = arith.constant 0 : index
    %c0_16 = arith.constant 0 : index
    %c0_17 = arith.constant 0 : index
    %111 = vector.load %arg1[%c0_15, %c0_16, %c0_17] : memref<2x8x64xf32, #tpu.memory_space<vmem>>, vector<1x8x64xf32>
    %112 = vector.shape_cast %111 : vector<1x8x64xf32> to vector<8x64xf32>
    %c1_18 = arith.constant 1 : index
    %c0_19 = arith.constant 0 : index
    %c0_20 = arith.constant 0 : index
    %113 = vector.load %arg1[%c1_18, %c0_19, %c0_20] : memref<2x8x64xf32, #tpu.memory_space<vmem>>, vector<1x8x64xf32>
    %114 = vector.shape_cast %113 : vector<1x8x64xf32> to vector<8x64xf32>
    %115 = tpu.concatenate %112, %114 in 1 : vector<8x64xf32>, vector<8x64xf32> -> vector<8x128xf32>
    %116 = vector.extract_strided_slice %110 {offsets = [0, 0], sizes = [8, 16], strides = [1, 1]} : vector<8x128xf32> to vector<8x16xf32>
    %cst_21 = arith.constant dense<0xFF800000> : vector<8xf32>
    %117 = vector.multi_reduction <maximumf>, %116, %cst_21 [1] : vector<8x16xf32> to vector<8xf32>
    %118 = vector.shape_cast %117 : vector<8xf32> to vector<8x1xf32>
    %119 = vector.extract_strided_slice %115 {offsets = [0, 0], sizes = [8, 16], strides = [1, 1]} : vector<8x128xf32> to vector<8x16xf32>
    %cst_22 = arith.constant dense<0xFF800000> : vector<8xf32>
    %120 = vector.multi_reduction <maximumf>, %119, %cst_22 [1] : vector<8x16xf32> to vector<8xf32>
    %121 = vector.shape_cast %120 : vector<8xf32> to vector<8x1xf32>
    %122 = vector.shape_cast %118 : vector<8x1xf32> to vector<8x1xf32>
    %123 = vector.broadcast %122 : vector<8x1xf32> to vector<8x16xf32>
    %124 = vector.shape_cast %121 : vector<8x1xf32> to vector<8x1xf32>
    %125 = vector.broadcast %124 : vector<8x1xf32> to vector<8x16xf32>
    %126 = vector.extract_strided_slice %110 {offsets = [0, 16], sizes = [8, 16], strides = [1, 1]} : vector<8x128xf32> to vector<8x16xf32>
    %cst_23 = arith.constant dense<0xFF800000> : vector<8xf32>
    %127 = vector.multi_reduction <maximumf>, %126, %cst_23 [1] : vector<8x16xf32> to vector<8xf32>
    %128 = vector.shape_cast %127 : vector<8xf32> to vector<8x1xf32>
    %129 = vector.extract_strided_slice %115 {offsets = [0, 16], sizes = [8, 16], strides = [1, 1]} : vector<8x128xf32> to vector<8x16xf32>
    %cst_24 = arith.constant dense<0xFF800000> : vector<8xf32>
    %130 = vector.multi_reduction <maximumf>, %129, %cst_24 [1] : vector<8x16xf32> to vector<8xf32>
    %131 = vector.shape_cast %130 : vector<8xf32> to vector<8x1xf32>
    %132 = vector.shape_cast %128 : vector<8x1xf32> to vector<8x1xf32>
    %133 = vector.broadcast %132 : vector<8x1xf32> to vector<8x16xf32>
    %134 = vector.shape_cast %131 : vector<8x1xf32> to vector<8x1xf32>
    %135 = vector.broadcast %134 : vector<8x1xf32> to vector<8x16xf32>
    %136 = vector.extract_strided_slice %110 {offsets = [0, 32], sizes = [8, 16], strides = [1, 1]} : vector<8x128xf32> to vector<8x16xf32>
    %cst_25 = arith.constant dense<0xFF800000> : vector<8xf32>
    %137 = vector.multi_reduction <maximumf>, %136, %cst_25 [1] : vector<8x16xf32> to vector<8xf32>
    %138 = vector.shape_cast %137 : vector<8xf32> to vector<8x1xf32>
    %139 = vector.extract_strided_slice %115 {offsets = [0, 32], sizes = [8, 16], strides = [1, 1]} : vector<8x128xf32> to vector<8x16xf32>
    %cst_26 = arith.constant dense<0xFF800000> : vector<8xf32>
    %140 = vector.multi_reduction <maximumf>, %139, %cst_26 [1] : vector<8x16xf32> to vector<8xf32>
    %141 = vector.shape_cast %140 : vector<8xf32> to vector<8x1xf32>
    %142 = vector.shape_cast %138 : vector<8x1xf32> to vector<8x1xf32>
    %143 = vector.broadcast %142 : vector<8x1xf32> to vector<8x16xf32>
    %144 = vector.shape_cast %141 : vector<8x1xf32> to vector<8x1xf32>
    %145 = vector.broadcast %144 : vector<8x1xf32> to vector<8x16xf32>
    %146 = vector.extract_strided_slice %110 {offsets = [0, 48], sizes = [8, 16], strides = [1, 1]} : vector<8x128xf32> to vector<8x16xf32>
    %cst_27 = arith.constant dense<0xFF800000> : vector<8xf32>
    %147 = vector.multi_reduction <maximumf>, %146, %cst_27 [1] : vector<8x16xf32> to vector<8xf32>
    %148 = vector.shape_cast %147 : vector<8xf32> to vector<8x1xf32>
    %149 = vector.extract_strided_slice %115 {offsets = [0, 48], sizes = [8, 16], strides = [1, 1]} : vector<8x128xf32> to vector<8x16xf32>
    %cst_28 = arith.constant dense<0xFF800000> : vector<8xf32>
    %150 = vector.multi_reduction <maximumf>, %149, %cst_28 [1] : vector<8x16xf32> to vector<8xf32>
    %151 = vector.shape_cast %150 : vector<8xf32> to vector<8x1xf32>
    %152 = vector.shape_cast %148 : vector<8x1xf32> to vector<8x1xf32>
    %153 = vector.broadcast %152 : vector<8x1xf32> to vector<8x16xf32>
    %154 = vector.shape_cast %151 : vector<8x1xf32> to vector<8x1xf32>
    %155 = vector.broadcast %154 : vector<8x1xf32> to vector<8x16xf32>
    %156 = vector.extract_strided_slice %110 {offsets = [0, 64], sizes = [8, 16], strides = [1, 1]} : vector<8x128xf32> to vector<8x16xf32>
    %cst_29 = arith.constant dense<0xFF800000> : vector<8xf32>
    %157 = vector.multi_reduction <maximumf>, %156, %cst_29 [1] : vector<8x16xf32> to vector<8xf32>
    %158 = vector.shape_cast %157 : vector<8xf32> to vector<8x1xf32>
    %159 = vector.extract_strided_slice %115 {offsets = [0, 64], sizes = [8, 16], strides = [1, 1]} : vector<8x128xf32> to vector<8x16xf32>
    %cst_30 = arith.constant dense<0xFF800000> : vector<8xf32>
    %160 = vector.multi_reduction <maximumf>, %159, %cst_30 [1] : vector<8x16xf32> to vector<8xf32>
    %161 = vector.shape_cast %160 : vector<8xf32> to vector<8x1xf32>
    %162 = vector.shape_cast %158 : vector<8x1xf32> to vector<8x1xf32>
    %163 = vector.broadcast %162 : vector<8x1xf32> to vector<8x16xf32>
    %164 = vector.shape_cast %161 : vector<8x1xf32> to vector<8x1xf32>
    %165 = vector.broadcast %164 : vector<8x1xf32> to vector<8x16xf32>
    %166 = vector.extract_strided_slice %110 {offsets = [0, 80], sizes = [8, 16], strides = [1, 1]} : vector<8x128xf32> to vector<8x16xf32>
    %cst_31 = arith.constant dense<0xFF800000> : vector<8xf32>
    %167 = vector.multi_reduction <maximumf>, %166, %cst_31 [1] : vector<8x16xf32> to vector<8xf32>
    %168 = vector.shape_cast %167 : vector<8xf32> to vector<8x1xf32>
    %169 = vector.extract_strided_slice %115 {offsets = [0, 80], sizes = [8, 16], strides = [1, 1]} : vector<8x128xf32> to vector<8x16xf32>
    %cst_32 = arith.constant dense<0xFF800000> : vector<8xf32>
    %170 = vector.multi_reduction <maximumf>, %169, %cst_32 [1] : vector<8x16xf32> to vector<8xf32>
    %171 = vector.shape_cast %170 : vector<8xf32> to vector<8x1xf32>
    %172 = vector.shape_cast %168 : vector<8x1xf32> to vector<8x1xf32>
    %173 = vector.broadcast %172 : vector<8x1xf32> to vector<8x16xf32>
    %174 = vector.shape_cast %171 : vector<8x1xf32> to vector<8x1xf32>
    %175 = vector.broadcast %174 : vector<8x1xf32> to vector<8x16xf32>
    %176 = vector.extract_strided_slice %110 {offsets = [0, 96], sizes = [8, 16], strides = [1, 1]} : vector<8x128xf32> to vector<8x16xf32>
    %cst_33 = arith.constant dense<0xFF800000> : vector<8xf32>
    %177 = vector.multi_reduction <maximumf>, %176, %cst_33 [1] : vector<8x16xf32> to vector<8xf32>
    %178 = vector.shape_cast %177 : vector<8xf32> to vector<8x1xf32>
    %179 = vector.extract_strided_slice %115 {offsets = [0, 96], sizes = [8, 16], strides = [1, 1]} : vector<8x128xf32> to vector<8x16xf32>
    %cst_34 = arith.constant dense<0xFF800000> : vector<8xf32>
    %180 = vector.multi_reduction <maximumf>, %179, %cst_34 [1] : vector<8x16xf32> to vector<8xf32>
    %181 = vector.shape_cast %180 : vector<8xf32> to vector<8x1xf32>
    %182 = vector.shape_cast %178 : vector<8x1xf32> to vector<8x1xf32>
    %183 = vector.broadcast %182 : vector<8x1xf32> to vector<8x16xf32>
    %184 = vector.shape_cast %181 : vector<8x1xf32> to vector<8x1xf32>
    %185 = vector.broadcast %184 : vector<8x1xf32> to vector<8x16xf32>
    %186 = vector.extract_strided_slice %110 {offsets = [0, 112], sizes = [8, 16], strides = [1, 1]} : vector<8x128xf32> to vector<8x16xf32>
    %cst_35 = arith.constant dense<0xFF800000> : vector<8xf32>
    %187 = vector.multi_reduction <maximumf>, %186, %cst_35 [1] : vector<8x16xf32> to vector<8xf32>
    %188 = vector.shape_cast %187 : vector<8xf32> to vector<8x1xf32>
    %189 = vector.extract_strided_slice %115 {offsets = [0, 112], sizes = [8, 16], strides = [1, 1]} : vector<8x128xf32> to vector<8x16xf32>
    %cst_36 = arith.constant dense<0xFF800000> : vector<8xf32>
    %190 = vector.multi_reduction <maximumf>, %189, %cst_36 [1] : vector<8x16xf32> to vector<8xf32>
    %191 = vector.shape_cast %190 : vector<8xf32> to vector<8x1xf32>
    %192 = vector.shape_cast %188 : vector<8x1xf32> to vector<8x1xf32>
    %193 = vector.broadcast %192 : vector<8x1xf32> to vector<8x16xf32>
    %194 = vector.shape_cast %191 : vector<8x1xf32> to vector<8x1xf32>
    %195 = vector.broadcast %194 : vector<8x1xf32> to vector<8x16xf32>
    %196 = tpu.concatenate %123, %133, %143, %153, %163, %173, %183, %193 in 1 : vector<8x16xf32>, vector<8x16xf32>, vector<8x16xf32>, vector<8x16xf32>, vector<8x16xf32>, vector<8x16xf32>, vector<8x16xf32>, vector<8x16xf32> -> vector<8x128xf32>
    %197 = tpu.concatenate %125, %135, %145, %155, %165, %175, %185, %195 in 1 : vector<8x16xf32>, vector<8x16xf32>, vector<8x16xf32>, vector<8x16xf32>, vector<8x16xf32>, vector<8x16xf32>, vector<8x16xf32>, vector<8x16xf32> -> vector<8x128xf32>
    %198 = tpu.concatenate %121, %131, %141, %151, %161, %171, %181, %191 in 1 : vector<8x1xf32>, vector<8x1xf32>, vector<8x1xf32>, vector<8x1xf32>, vector<8x1xf32>, vector<8x1xf32>, vector<8x1xf32>, vector<8x1xf32> -> vector<8x8xf32>
    %199 = arith.subf %110, %196 : vector<8x128xf32>
    %200 = math.exp %199 : vector<8x128xf32>
    %201 = arith.subf %115, %197 : vector<8x128xf32>
    %202 = math.exp %201 : vector<8x128xf32>
    %203 = arith.mulf %200, %115 : vector<8x128xf32>
    %204 = tpu.iota {dimensions = array<i32: 1>} : vector<16x8xi32>
    %c0_i32_37 = arith.constant 0 : i32
    %205 = vector.broadcast %c0_i32_37 : i32 to vector<16x8xi32>
    %206 = arith.cmpi eq, %204, %205 : vector<16x8xi32>
    %207 = arith.extui %206 : vector<16x8xi1> to vector<16x8xi32>
    %208 = arith.sitofp %207 : vector<16x8xi32> to vector<16x8xf32>
    %209 = tpu.iota {dimensions = array<i32: 1>} : vector<16x8xi32>
    %c1_i32 = arith.constant 1 : i32
    %210 = vector.broadcast %c1_i32 : i32 to vector<16x8xi32>
    %211 = arith.cmpi eq, %209, %210 : vector<16x8xi32>
    %212 = arith.extui %211 : vector<16x8xi1> to vector<16x8xi32>
    %213 = arith.sitofp %212 : vector<16x8xi32> to vector<16x8xf32>
    %214 = tpu.iota {dimensions = array<i32: 1>} : vector<16x8xi32>
    %c2_i32 = arith.constant 2 : i32
    %215 = vector.broadcast %c2_i32 : i32 to vector<16x8xi32>
    %216 = arith.cmpi eq, %214, %215 : vector<16x8xi32>
    %217 = arith.extui %216 : vector<16x8xi1> to vector<16x8xi32>
    %218 = arith.sitofp %217 : vector<16x8xi32> to vector<16x8xf32>
    %219 = tpu.iota {dimensions = array<i32: 1>} : vector<16x8xi32>
    %c3_i32 = arith.constant 3 : i32
    %220 = vector.broadcast %c3_i32 : i32 to vector<16x8xi32>
    %221 = arith.cmpi eq, %219, %220 : vector<16x8xi32>
    %222 = arith.extui %221 : vector<16x8xi1> to vector<16x8xi32>
    %223 = arith.sitofp %222 : vector<16x8xi32> to vector<16x8xf32>
    %224 = tpu.iota {dimensions = array<i32: 1>} : vector<16x8xi32>
    %c4_i32 = arith.constant 4 : i32
    %225 = vector.broadcast %c4_i32 : i32 to vector<16x8xi32>
    %226 = arith.cmpi eq, %224, %225 : vector<16x8xi32>
    %227 = arith.extui %226 : vector<16x8xi1> to vector<16x8xi32>
    %228 = arith.sitofp %227 : vector<16x8xi32> to vector<16x8xf32>
    %229 = tpu.iota {dimensions = array<i32: 1>} : vector<16x8xi32>
    %c5_i32 = arith.constant 5 : i32
    %230 = vector.broadcast %c5_i32 : i32 to vector<16x8xi32>
    %231 = arith.cmpi eq, %229, %230 : vector<16x8xi32>
    %232 = arith.extui %231 : vector<16x8xi1> to vector<16x8xi32>
    %233 = arith.sitofp %232 : vector<16x8xi32> to vector<16x8xf32>
    %234 = tpu.iota {dimensions = array<i32: 1>} : vector<16x8xi32>
    %c6_i32 = arith.constant 6 : i32
    %235 = vector.broadcast %c6_i32 : i32 to vector<16x8xi32>
    %236 = arith.cmpi eq, %234, %235 : vector<16x8xi32>
    %237 = arith.extui %236 : vector<16x8xi1> to vector<16x8xi32>
    %238 = arith.sitofp %237 : vector<16x8xi32> to vector<16x8xf32>
    %239 = tpu.iota {dimensions = array<i32: 1>} : vector<16x8xi32>
    %c7_i32 = arith.constant 7 : i32
    %240 = vector.broadcast %c7_i32 : i32 to vector<16x8xi32>
    %241 = arith.cmpi eq, %239, %240 : vector<16x8xi32>
    %242 = arith.extui %241 : vector<16x8xi1> to vector<16x8xi32>
    %243 = arith.sitofp %242 : vector<16x8xi32> to vector<16x8xf32>
    %244 = tpu.concatenate %208, %213, %218, %223, %228, %233, %238, %243 in 0 : vector<16x8xf32>, vector<16x8xf32>, vector<16x8xf32>, vector<16x8xf32>, vector<16x8xf32>, vector<16x8xf32>, vector<16x8xf32>, vector<16x8xf32> -> vector<128x8xf32>
    %cst_38 = arith.constant dense<0.000000e+00> : vector<8x8xf32>
    %245 = tpu.matmul %202, %244, %cst_38 {dimension_numbers = #tpu.dot_dimension_numbers<[1], [0], [0], [1], [0, 0, 1, 1], [], []>} : vector<8x128xf32>, vector<128x8xf32>, vector<8x8xf32> -> vector<8x8xf32>
    %cst_39 = arith.constant dense<0.000000e+00> : vector<8x8xf32>
    %246 = tpu.matmul %200, %244, %cst_39 {dimension_numbers = #tpu.dot_dimension_numbers<[1], [0], [0], [1], [0, 0, 1, 1], [], []>} : vector<8x128xf32>, vector<128x8xf32>, vector<8x8xf32> -> vector<8x8xf32>
    %cst_40 = arith.constant dense<0.000000e+00> : vector<8x8xf32>
    %247 = tpu.matmul %203, %244, %cst_40 {dimension_numbers = #tpu.dot_dimension_numbers<[1], [0], [0], [1], [0, 0, 1, 1], [], []>} : vector<8x128xf32>, vector<128x8xf32>, vector<8x8xf32> -> vector<8x8xf32>
    %248 = math.log %245 : vector<8x8xf32>
    %249 = arith.addf %248, %198 : vector<8x8xf32>
    %250 = arith.divf %247, %246 : vector<8x8xf32>
    %251 = arith.subf %249, %250 : vector<8x8xf32>
    %252 = arith.mulf %90, %251 : vector<8x8xf32>
    %cst_41 = arith.constant dense<0.000000e+00> : vector<8xf32>
    %253 = vector.multi_reduction <add>, %252, %cst_41 [1] : vector<8x8xf32> to vector<8xf32>
    %254 = vector.shape_cast %253 : vector<8xf32> to vector<8x1xf32>
    %cst_42 = arith.constant dense<0.000000e+00> : vector<1xf32>
    %255 = vector.multi_reduction <add>, %254, %cst_42 [0] : vector<8x1xf32> to vector<1xf32>
    %256 = vector.shape_cast %255 : vector<1xf32> to vector<1x1xf32>
    %c0_43 = arith.constant 0 : index
    %c0_44 = arith.constant 0 : index
    %c0_45 = arith.constant 0 : index
    %257 = vector.load %arg3[%c0_43, %c0_44, %c0_45] : memref<1x1x1xf32, #tpu.memory_space<vmem>>, vector<1x1x1xf32>
    %258 = vector.shape_cast %257 : vector<1x1x1xf32> to vector<1x1xf32>
    %259 = vector.shape_cast %256 : vector<1x1xf32> to vector<1x1x1xf32>
    tpu.vector_store %arg3[%c0_43, %c0_44, %c0_45], %259 {strides = array<i32>} : memref<1x1x1xf32, #tpu.memory_space<vmem>>, vector<1x1x1xf32>,
    return
  }
  func.func @transform_0(%arg0: i32) -> (i32, i32, i32) {
    %c0_i32 = arith.constant 0 : i32
    %c0_i32_0 = arith.constant 0 : i32
    %c0_i32_1 = arith.constant 0 : i32
    return %arg0, %c0_i32, %c0_i32_0 : i32, i32, i32
  }
  func.func @transform_1(%arg0: i32) -> (i32, i32, i32) {
    %c0_i32 = arith.constant 0 : i32
    %c0_i32_0 = arith.constant 0 : i32
    %c0_i32_1 = arith.constant 0 : i32
    return %arg0, %c0_i32, %c0_i32_0 : i32, i32, i32
  }
  func.func @transform_2(%arg0: i32) -> (i32, i32, i32) {
    %c0_i32 = arith.constant 0 : i32
    %c0_i32_0 = arith.constant 0 : i32
    %c0_i32_1 = arith.constant 0 : i32
    return %arg0, %c0_i32, %c0_i32_0 : i32, i32, i32
  }
}

</mosaic_0001>

<llo_original>
// kernel: time_decay_loss.1
$region0: #{time_decay_loss.1}
  #allocation0 [shape = 'u32[]', space=smem, size = 0x4, offset = 0x4, fixed_abs, tag = 'smem constant byte address 0x4 - core index']
  #allocation1 [shape = 'u32[144,128]{1,0:T(1,128)}', space=vmem, size = 0x12000, scoped, tag = 'internal scratch']
  %s0 = inlined_call_operand.vmem [shape: f32[4,8,64], index: 0, kind: input, shape index: {}]
  %s1 = inlined_call_operand.vmem [shape: f32[4,8,4], index: 1, kind: input, shape index: {}]
  %s2 = inlined_call_operand.vmem [shape: f32[2,1,1], index: 2, kind: output, shape index: {}]
  %s3 = sld [smem:[#allocation0]]
  $region41: #{time_decay_loss.1} parent=0
    _
  %s5 = ssub.s32 1, %s3
  %s6 = scalar_select 0, %s5, %s3
  loop: start=0, step=1, limit=4
  $region2: #{time_decay_loss.1} parent=0 // loop_pre_header
    _
  $region3: #{time_decay_loss.1} parent=0 // loop_header
    %s8 = sphi 0, %s12
    %p9 = scmp.ge.s32.totalorder %s8, 4
    %s18 = sphi 0, %s20
    %s21 = sphi 0, %s18
    %s22 = sphi 0, %s21
    %s38 = sphi 0, %s22
    %s44 = sphi 0, %s46
    %s47 = sphi 0, %s44
    %s48 = sphi 0, %s47
    %s64 = sphi 0, %s48
    %s70 = sphi 0, %s72
    %s73 = sphi 0, %s70
    %s74 = sphi 0, %s73
    %s90 = sphi 0, %s74
  $region4: #{time_decay_loss.1} parent=0 // loop_header_branch
    %11 = sbr.rel (%p9) target = $region8
  $region5: #{time_decay_loss.1} parent=0 // loop_body
    %s13 = ssub.s32 %s8, 1
    %s14 = ssub.s32 %s8, 2
    %s15 = sadd.s32 %s8, 1
    %s16 = ssub.s32 %s8, %s15
    %p17 = scmp.eq.s32.totalorder %s16, 0
    %s19 = sadd.s32 %s18, 1
    %s20 = scalar_select %p17, %s18, %s19
    %p23 = pneg %p17
    %p24 = scmp.eq.s32.totalorder %s8, 1
    %p25 = por %p23, %p24
    %p26 = scmp.ne.s32.totalorder %s18, %s21
    %p27 = scmp.eq.s32.totalorder %s8, 0
    %p28 = por %p26, %p27
    %p29 = scmp.ne.s32.totalorder %s18, %s21
    %p30 = scmp.eq.s32.totalorder %s13, 1
    %p31 = por %p29, %p30
    %p32 = scmp.ne.s32.totalorder %s21, %s22
    %p33 = scmp.eq.s32.totalorder %s13, 0
    %p34 = por %p32, %p33
    %p35 = scmp.ne.s32.totalorder %s21, %s22
    %p36 = scmp.eq.s32.totalorder %s14, 1
    %p37 = por %p35, %p36
    %p39 = scmp.ne.s32.totalorder %s22, %s38
    %p40 = scmp.eq.s32.totalorder %s14, 0
    %p41 = por %p39, %p40
    %s42 = ssub.s32 %s8, %s15
    %p43 = scmp.eq.s32.totalorder %s42, 0
    %s45 = sadd.s32 %s44, 1
    %s46 = scalar_select %p43, %s44, %s45
    %p49 = pneg %p43
    %p50 = scmp.eq.s32.totalorder %s8, 1
    %p51 = por %p49, %p50
    %p52 = scmp.ne.s32.totalorder %s44, %s47
    %p53 = scmp.eq.s32.totalorder %s8, 0
    %p54 = por %p52, %p53
    %p55 = scmp.ne.s32.totalorder %s44, %s47
    %p56 = scmp.eq.s32.totalorder %s13, 1
    %p57 = por %p55, %p56
    %p58 = scmp.ne.s32.totalorder %s47, %s48
    %p59 = scmp.eq.s32.totalorder %s13, 0
    %p60 = por %p58, %p59
    %p61 = scmp.ne.s32.totalorder %s47, %s48
    %p62 = scmp.eq.s32.totalorder %s14, 1
    %p63 = por %p61, %p62
    %p65 = scmp.ne.s32.totalorder %s48, %s64
    %p66 = scmp.eq.s32.totalorder %s14, 0
    %p67 = por %p65, %p66
    %s68 = ssub.s32 %s8, %s15
    %p69 = scmp.eq.s32.totalorder %s68, 0
    %s71 = sadd.s32 %s70, 1
    %s72 = scalar_select %p69, %s70, %s71
    %p75 = pneg %p69
    %p76 = scmp.eq.s32.totalorder %s8, 1
    %p77 = por %p75, %p76
    %p78 = scmp.ne.s32.totalorder %s70, %s73
    %p79 = scmp.eq.s32.totalorder %s8, 0
    %p80 = por %p78, %p79
    %p81 = scmp.ne.s32.totalorder %s70, %s73
    %p82 = scmp.eq.s32.totalorder %s13, 1
    %p83 = por %p81, %p82
    %p84 = scmp.ne.s32.totalorder %s73, %s74
    %p85 = scmp.eq.s32.totalorder %s13, 0
    %p86 = por %p84, %p85
    %p87 = scmp.ne.s32.totalorder %s73, %s74
    %p88 = scmp.eq.s32.totalorder %s14, 1
    %p89 = por %p87, %p88
    %p91 = scmp.ne.s32.totalorder %s74, %s90
    %p92 = scmp.eq.s32.totalorder %s14, 0
    %p93 = por %p91, %p92
    %p94 = scmp.le.s32.totalorder 1, %s8
    %p95 = scmp.lt.s32.totalorder %s8, 3
    %p96 = pnand %p94, %p95
    %p97 = pneg %p96
    // Predicated region
    $region9: #{time_decay_loss.1} parent=5 // pred_check
      _
    $region10: #{time_decay_loss.1} parent=5 // pred_check_branch
      %99 = sbr.rel (%p96) target = $region12
    $region11: #{time_decay_loss.1} parent=5 // pred_region
      %s100 = ssub.s32 %s8, 1
    $region12: #{time_decay_loss.1} parent=5 // pred_fallthru
      _
    %p101 = scmp.lt.s32.totalorder %s8, 2
    // Predicated region
    $region13: #{time_decay_loss.1} parent=5 // pred_check
      %p102 = pneg %p101
    $region14: #{time_decay_loss.1} parent=5 // pred_check_branch
      %104 = sbr.rel (%p102) target = $region16
    $region15: #{time_decay_loss.1} parent=5 // pred_region
      // Predicated region
      $region17: #{time_decay_loss.1} parent=15 // pred_check
        %p105 = pneg %p28
      $region18: #{time_decay_loss.1} parent=15 // pred_check_branch
        %107 = sbr.rel (%p105) target = $region20
      $region19: #{time_decay_loss.1} parent=15 // pred_region
        %s108 = smul.u32 2, %s8
        %p109 = scmp.lt.s32.totalorder %s108, 3
        %s110 = scalar_select %p109, %s108, 3
        %s111 = smul.addr %s110, 8
        %s112 = scalar_lea.vmem %s0, %s111
        %s113 = smul.u32 2, %s8
      $region20: #{time_decay_loss.1} parent=15 // pred_fallthru
        _
      // Predicated region
      $region21: #{time_decay_loss.1} parent=15 // pred_check
        %p114 = pneg %p54
      $region22: #{time_decay_loss.1} parent=15 // pred_check_branch
        %116 = sbr.rel (%p114) target = $region24
      $region23: #{time_decay_loss.1} parent=15 // pred_region
        %s117 = smul.u32 2, %s8
        %p118 = scmp.lt.s32.totalorder %s117, 3
        %s119 = scalar_select %p118, %s117, 3
        %s120 = smul.addr %s119, 8
        %s121 = scalar_lea.vmem %s1, %s120
        %s122 = smul.u32 2, %s8
      $region24: #{time_decay_loss.1} parent=15 // pred_fallthru
        _
    $region16: #{time_decay_loss.1} parent=5 // pred_fallthru
      _
    %p123 = scmp.le.s32.totalorder 1, %s8
    %p124 = scmp.lt.s32.totalorder %s8, 3
    %p125 = pnand %p123, %p124
    %p126 = pneg %p125
    // Predicated region
    $region25: #{time_decay_loss.1} parent=5 // pred_check
      _
    $region26: #{time_decay_loss.1} parent=5 // pred_check_branch
      %128 = sbr.rel (%p125) target = $region28
    $region27: #{time_decay_loss.1} parent=5 // pred_region
      %s129 = ssub.s32 %s8, 1
      %s130 = smul.u32 2, %s13
      %p131 = scmp.lt.s32.totalorder %s130, 3
      %s132 = scalar_select %p131, %s130, 3
      %s133 = smul.addr %s132, 8
      %s134 = scalar_lea.vmem %s0, %s133
      %p135 = pneg %p34
      %p136 = pneg %p31
      %s137 = smul.u32 2, %s13
      %p138 = scmp.lt.s32.totalorder %s137, 3
      %s139 = scalar_select %p138, %s137, 3
      %s140 = smul.addr %s139, 8
      %s141 = scalar_lea.vmem %s1, %s140
      %p142 = pneg %p60
      %p143 = pneg %p57
      %p144 = pneg %p86
      %p145 = pneg %p83
      %p146 = scmp.lt.s32.totalorder %s13, 1
      %s147 = scalar_select %p146, %s13, 1
      %s148 = scalar_lea.vmem %s2, %s147
      %s149 = smul.u32 2, %s13
      %p150 = scmp.lt.s32.totalorder %s149, 3
      %s151 = scalar_select %p150, %s149, 3
      %s152 = smul.addr %s151, 8
      %s153 = scalar_lea.vmem %s0, %s152
      %s154 = smul.u32 2, %s13
      %s155 = smul.u32 2, %s13
      %p156 = scmp.lt.s32.totalorder %s155, 3
      %s157 = scalar_select %p156, %s155, 3
      %s158 = smul.addr %s157, 8
      %s159 = scalar_lea.vmem %s1, %s158
      %s160 = smul.u32 2, %s13
      %p161 = scmp.lt.s32.totalorder %s13, 1
      %s162 = scalar_select %p161, %s13, 1
      %s163 = scalar_lea.vmem %s2, %s162
      %v164 = vlaneseq
      %v165 = vand.u32 %v164, 127
      %166 = vrot.lane.b32.xlu0 %v165, 16
      %v167 = vpop.permute.xlu0 %166
      %168 = vrot.lane.b32.xlu0 %v165, 32
      %v169 = vpop.permute.xlu0 %168
      %170 = vrot.lane.b32.xlu0 %v165, 48
      %v171 = vpop.permute.xlu0 %170
      %vm172 = vcmask 130048
      %v173 = vsel %vm172, %v165, %v167
      %vm174 = vcmask 261120
      %v175 = vsel %vm174, %v173, %v169
      %vm176 = vcmask 392192
      %v177 = vsel %vm176, %v175, %v171
      %178 = vrot.lane.b32.xlu0 %v177, 64
      %v179 = vpop.permute.xlu0 %178
      %vm180 = vcmask 523264
      %v181 = vsel %vm180, %v177, %v179
      %v182 = vld [vmem:[%s159] sm:$0xff]
      %vm183 = vcmask 7168
      %v184 = vsel %vm183, %v182, 0.0
      %185 = vadd.xlane.f32.xlu0 %v184
      %v186 = vpop.xlane.xlu0 %185
      %v187 = vrot.slane %v186, 4
      %v188 = vadd.f32 %v186, %v187
      %v189 = vrot.slane %v188, 2
      %v190 = vadd.f32 %v188, %v189
      %v191 = vrot.slane %v190, 1
      %v192 = vadd.f32 %v190, %v191
      %s193 = vtos %v192
      %v194 = vrcp.pop 8.0
      %s195 = vtos %v194
      %s196 = smul.f32 %s193, %s195
      %v197 = vstv %s196
      %v198 = vsub.f32 %v182, %v197
      %v199 = vcvt.f32.s32.to.zero.pseudo %v182
      %s200 = scalar_lea.vmem %s159, 8
      %v201 = vld [vmem:[%s200] sm:$0xff]
      %v202 = vsel %vm183, %v201, 0.0
      %203 = vadd.xlane.f32.xlu0 %v202
      %v204 = vpop.xlane.xlu0 %203
      %v205 = vrot.slane %v204, 4
      %v206 = vadd.f32 %v204, %v205
      %v207 = vrot.slane %v206, 2
      %v208 = vadd.f32 %v206, %v207
      %v209 = vrot.slane %v208, 1
      %v210 = vadd.f32 %v208, %v209
      %s211 = vtos %v210
      %v212 = vrcp.pop 8.0
      %s213 = vtos %v212
      %s214 = smul.f32 %s211, %s213
      %v215 = vstv %s214
      %v216 = vsub.f32 %v201, %v215
      %v217 = vcvt.f32.s32.to.zero.pseudo %v201
      %219 = vrot.lane.b32.xlu0 %v216, 1
      %v220 = vpop.permute.xlu0 %219
      %v222 = vsel %vm183, %v198, %v220
      %v223 = vmul.f32 %v222, 0.00390625
      %v224 = vsub.f32 0.0, %v223
      %226 = vrot.lane.b32.xlu0 %v223, 2
      %v227 = vpop.permute.xlu0 %226
      %vm229 = vcmask 15360
      %v230 = vsel %vm229, %v224, %v227
      %v231 = vmul.f32 %v230, 1.442695
      %v232 = vpow.pop %v231
      %v233 = vsub.f32 1.0, %v182
      %235 = vrot.lane.b32.xlu0 %v232, 3
      %v236 = vpop.permute.xlu0 %235
      %v238 = vmul.f32 %v233, %v236
      %v239 = vmul.f32 %v182, %v236
      %240 = vset.pattern.permute.xlu0 1
      %241 = vperm.xlu0 %240, %v199
      %v242 = vpop.permute.xlu0 %241
      %243 = vset.pattern.permute.xlu0 2
      %244 = vperm.xlu0 %243, %v199
      %v245 = vpop.permute.xlu0 %244
      %v246 = vsel %vm174, %v242, %v245
      %248 = vset.pattern.permute.xlu0 3
      %249 = vperm.xlu0 %248, %v238
      %v250 = vpop.permute.xlu0 %249
      %253 = vset.pattern.permute.xlu0 3
      %254 = vperm.xlu0 %253, %v239
      %v255 = vpop.permute.xlu0 %254
      %v257 = vsel %vm172, %v250, %v255
      %v258 = vsel %vm174, %v257, %v250
      %v259 = vsel %vm176, %v258, %v255
      %260 = vset.pattern.permute.xlu0 2
      %261 = vperm.xlu0 %260, %v232
      %v262 = vpop.permute.xlu0 %261
      %265 = vrot.lane.b32.xlu0 %v233, 125
      %v266 = vpop.permute.xlu0 %265
      %269 = vrot.lane.b32.xlu0 %v182, 126
      %v270 = vpop.permute.xlu0 %269
      %272 = vrot.lane.b32.xlu0 %v233, 127
      %v273 = vpop.permute.xlu0 %272
      %v275 = vsel %vm183, %v266, %v270
      %v276 = vsel %vm229, %v275, %v273
      %vm277 = vcmask 23552
      %v278 = vsel %vm277, %v276, %v182
      %v279 = vsub.f32 1.0, %v201
      %280 = vrot.lane.b32.xlu0 %v232, 2
      %v281 = vpop.permute.xlu0 %280
      %v283 = vmul.f32 %v279, %v281
      %v284 = vmul.f32 %v201, %v281
      %285 = vset.pattern.permute.xlu0 1
      %286 = vperm.xlu0 %285, %v217
      %v287 = vpop.permute.xlu0 %286
      %288 = vset.pattern.permute.xlu0 2
      %289 = vperm.xlu0 %288, %v217
      %v290 = vpop.permute.xlu0 %289
      %v291 = vsel %vm174, %v287, %v290
      %293 = vset.pattern.permute.xlu0 3
      %294 = vperm.xlu0 %293, %v283
      %v295 = vpop.permute.xlu0 %294
      %298 = vset.pattern.permute.xlu0 3
      %299 = vperm.xlu0 %298, %v284
      %v300 = vpop.permute.xlu0 %299
      %v302 = vsel %vm172, %v295, %v300
      %v303 = vsel %vm174, %v302, %v295
      %v304 = vsel %vm176, %v303, %v300
      %305 = vset.pattern.permute.xlu0 3
      %306 = vperm.xlu0 %305, %v232
      %v307 = vpop.permute.xlu0 %306
      %310 = vrot.lane.b32.xlu0 %v279, 125
      %v311 = vpop.permute.xlu0 %310
      %314 = vrot.lane.b32.xlu0 %v201, 126
      %v315 = vpop.permute.xlu0 %314
      %317 = vrot.lane.b32.xlu0 %v279, 127
      %v318 = vpop.permute.xlu0 %317
      %v320 = vsel %vm183, %v311, %v315
      %v321 = vsel %vm229, %v320, %v318
      %v322 = vsel %vm277, %v321, %v201
      %323 = vrot.lane.b32.xlu0 %v291, 64
      %v324 = vpop.permute.xlu0 %323
      %v325 = vsel %vm180, %v246, %v324
      %327 = vrot.lane.b32.xlu0 %v304, 64
      %v328 = vpop.permute.xlu0 %327
      %v330 = vsel %vm180, %v259, %v328
      %v331 = vsel %vm180, %v262, %v307
      %333 = vrot.lane.b32.xlu0 %v322, 4
      %v334 = vpop.permute.xlu0 %333
      %vm336 = vcmask 31744
      %v337 = vsel %vm336, %v278, %v334
      %vm338 = vcmp.eq.s32.totalorder %v181, %v325
      %v339 = vsel %vm338, %v330, 0.0
      %v341 = vrot.slane %v339, 1
      %vm343 = vcmask 1046528
      %v344 = vsel %vm343, %v341, 0.0
      %v345 = vadd.f32 %v339, %v344
      %v347 = vrot.slane %v345, 2
      %vm349 = vcmask 1045504
      %v350 = vsel %vm349, %v347, 0.0
      %v351 = vadd.f32 %v345, %v350
      %v353 = vrot.slane %v351, 4
      %vm355 = vcmask 1043456
      %v356 = vsel %vm355, %v353, 0.0
      %v357 = vadd.f32 %v351, %v356
      %v358 = vlaneseq
      %v359 = vshrl.u32 %v358, 7
      %vm360 = vcmp.eq.s32.totalorder %v359, 0
      %v361 = vsel %vm360, %v339, %v357
      %v362 = vmul.f32 %v361, %v331
      %v363 = vld [vmem:[%s153] sm:$0xff]
      %s364 = scalar_lea.vmem %s153, 8
      %v365 = vld [vmem:[%s364] sm:$0xff]
      %367 = vrot.lane.b32.xlu0 %v365, 64
      %v368 = vpop.permute.xlu0 %367
      %v370 = vsel %vm180, %v363, %v368
      %v371 = vsel %vm172, %v362, -inf
      %372 = vmax.xlane.f32.xlu0 %v371
      %v373 = vpop.xlane.xlu0 %372
      %v374 = vsel %vm172, %v370, -inf
      %375 = vmax.xlane.f32.xlu0 %v374
      %v376 = vpop.xlane.xlu0 %375
      %vm377 = vcmask 261248
      %v378 = vsel %vm377, %v362, -inf
      %379 = vmax.xlane.f32.xlu0 %v378
      %v380 = vpop.xlane.xlu0 %379
      %v381 = vsel %vm377, %v370, -inf
      %382 = vmax.xlane.f32.xlu0 %v381
      %v383 = vpop.xlane.xlu0 %382
      %vm384 = vcmask 392448
      %v385 = vsel %vm384, %v362, -inf
      %386 = vmax.xlane.f32.xlu0 %v385
      %v387 = vpop.xlane.xlu0 %386
      %v388 = vsel %vm384, %v370, -inf
      %389 = vmax.xlane.f32.xlu0 %v388
      %v390 = vpop.xlane.xlu0 %389
      %vm391 = vcmask 523648
      %v392 = vsel %vm391, %v362, -inf
      %393 = vmax.xlane.f32.xlu0 %v392
      %v394 = vpop.xlane.xlu0 %393
      %v395 = vsel %vm391, %v370, -inf
      %396 = vmax.xlane.f32.xlu0 %v395
      %v397 = vpop.xlane.xlu0 %396
      %vm398 = vcmask 654848
      %v399 = vsel %vm398, %v362, -inf
      %400 = vmax.xlane.f32.xlu0 %v399
      %v401 = vpop.xlane.xlu0 %400
      %v402 = vsel %vm398, %v370, -inf
      %403 = vmax.xlane.f32.xlu0 %v402
      %v404 = vpop.xlane.xlu0 %403
      %vm405 = vcmask 786048
      %v406 = vsel %vm405, %v362, -inf
      %407 = vmax.xlane.f32.xlu0 %v406
      %v408 = vpop.xlane.xlu0 %407
      %v409 = vsel %vm405, %v370, -inf
      %410 = vmax.xlane.f32.xlu0 %v409
      %v411 = vpop.xlane.xlu0 %410
      %vm412 = vcmask 917248
      %v413 = vsel %vm412, %v362, -inf
      %414 = vmax.xlane.f32.xlu0 %v413
      %v415 = vpop.xlane.xlu0 %414
      %v416 = vsel %vm412, %v370, -inf
      %417 = vmax.xlane.f32.xlu0 %v416
      %v418 = vpop.xlane.xlu0 %417
      %vm419 = vcmask 1048448
      %v420 = vsel %vm419, %v362, -inf
      %421 = vmax.xlane.f32.xlu0 %v420
      %v422 = vpop.xlane.xlu0 %421
      %v423 = vsel %vm419, %v370, -inf
      %424 = vmax.xlane.f32.xlu0 %v423
      %v425 = vpop.xlane.xlu0 %424
      %v426 = vsel %vm172, %v373, %v380
      %v427 = vsel %vm174, %v426, %v387
      %v428 = vsel %vm176, %v427, %v394
      %v429 = vsel %vm180, %v428, %v401
      %vm430 = vcmask 654336
      %v431 = vsel %vm430, %v429, %v408
      %vm432 = vcmask 785408
      %v433 = vsel %vm432, %v431, %v415
      %vm434 = vcmask 916480
      %v435 = vsel %vm434, %v433, %v422
      %v436 = vsel %vm172, %v376, %v383
      %v437 = vsel %vm174, %v436, %v390
      %v438 = vsel %vm176, %v437, %v397
      %v439 = vsel %vm180, %v438, %v404
      %v440 = vsel %vm430, %v439, %v411
      %v441 = vsel %vm432, %v440, %v418
      %v442 = vsel %vm434, %v441, %v425
      %v443 = vsel %vm183, %v376, %v383
      %v444 = vsel %vm229, %v443, %v390
      %v445 = vsel %vm277, %v444, %v397
      %v446 = vsel %vm336, %v445, %v404
      %vm447 = vcmask 39936
      %v448 = vsel %vm447, %v446, %v411
      %vm449 = vcmask 48128
      %v450 = vsel %vm449, %v448, %v418
      %vm451 = vcmask 56320
      %v452 = vsel %vm451, %v450, %v425
      %v453 = vsub.f32 %v362, %v435
      %v454 = vmul.f32 %v453, 1.442695
      %v455 = vpow.pop %v454
      %v456 = vsub.f32 %v370, %v442
      %v457 = vmul.f32 %v456, 1.442695
      %v458 = vpow.pop %v457
      %v459 = vmul.f32 %v455, %v370
      %vm460 = vcmp.eq.s32.totalorder %v165, 0
      %v461 = vsel %vm460, 1, 0
      %v462 = vcvt.s32.f32 %v461
      %vm463 = vcmp.eq.s32.totalorder %v165, 1
      %v464 = vsel %vm463, 1, 0
      %v465 = vcvt.s32.f32 %v464
      %vm466 = vcmp.eq.s32.totalorder %v165, 2
      %v467 = vsel %vm466, 1, 0
      %v468 = vcvt.s32.f32 %v467
      %vm469 = vcmp.eq.s32.totalorder %v165, 3
      %v470 = vsel %vm469, 1, 0
      %v471 = vcvt.s32.f32 %v470
      %vm472 = vcmp.eq.s32.totalorder %v165, 4
      %v473 = vsel %vm472, 1, 0
      %v474 = vcvt.s32.f32 %v473
      %vm475 = vcmp.eq.s32.totalorder %v165, 5
      %v476 = vsel %vm475, 1, 0
      %v477 = vcvt.s32.f32 %v476
      %vm478 = vcmp.eq.s32.totalorder %v165, 6
      %v479 = vsel %vm478, 1, 0
      %v480 = vcvt.s32.f32 %v479
      %vm481 = vcmp.eq.s32.totalorder %v165, 7
      %v482 = vsel %vm481, 1, 0
      %v483 = vcvt.s32.f32 %v482
      %484 = vmatprep.subr.mxu0 0.0
      %485 = vmatpush1.msra.mxu0 %v462
      %486 = vmatprep.subr.mxu0 0.0
      %487 = vmatpush1.msra.mxu0 %v462
      %488 = vmatprep.subr.mxu0 0.0
      %489 = vmatpush1.msra.mxu0 %v465
      %490 = vmatprep.subr.mxu0 0.0
      %491 = vmatpush1.msra.mxu0 %v465
      %492 = vmatprep.subr.mxu0 0.0
      %493 = vmatpush1.msra.mxu0 %v468
      %494 = vmatprep.subr.mxu0 0.0
      %495 = vmatpush1.msra.mxu0 %v468
      %496 = vmatprep.subr.mxu0 0.0
      %497 = vmatpush1.msra.mxu0 %v471
      %498 = vmatprep.subr.mxu0 0.0
      %499 = vmatpush1.msra.mxu0 %v471
      %500 = vmatprep.subr.mxu0 0.0
      %501 = vmatpush1.msra.mxu0 %v474
      %502 = vmatprep.subr.mxu0 0.0
      %503 = vmatpush1.msra.mxu0 %v474
      %504 = vmatprep.subr.mxu0 0.0
      %505 = vmatpush1.msra.mxu0 %v477
      %506 = vmatprep.subr.mxu0 0.0
      %507 = vmatpush1.msra.mxu0 %v477
      %508 = vmatprep.subr.mxu0 0.0
      %509 = vmatpush1.msra.mxu0 %v480
      %510 = vmatprep.subr.mxu0 0.0
      %511 = vmatpush1.msra.mxu0 %v480
      %512 = vmatprep.subr.mxu0 0.0
      %513 = vmatpush1.msra.mxu0 %v483
      %514 = vmatprep.subr.mxu0 0.0
      %515 = vmatpush1.msra.mxu0 %v483
      %516 = vmatprep.subr.mxu0 0.0
      %517 = vmatpush1.msra.mxu0 0.0
      %518 = vmatprep.subr.mxu0 0.0
      %519 = vmatpush1.msra.mxu0 0.0
      %520 = vmatprep.subr.mxu0 0.0
      %521 = vmatpush1.msra.mxu0 0.0
      %522 = vmatprep.subr.mxu0 0.0
      %523 = vmatpush1.msra.mxu0 0.0
      %524 = vmatprep.subr.mxu0 0.0
      %525 = vmatpush1.msra.mxu0 0.0
      %526 = vmatprep.subr.mxu0 0.0
      %527 = vmatpush1.msra.mxu0 0.0
      %528 = vmatprep.subr.mxu0 0.0
      %529 = vmatpush1.msra.mxu0 0.0
      %530 = vmatprep.subr.mxu0 0.0
      %531 = vmatpush1.msra.mxu0 0.0
      %532 = vmatprep.subr.mxu0 0.0
      %533 = vmatpush1.msra.mxu0 0.0
      %534 = vmatprep.subr.mxu0 0.0
      %535 = vmatpush1.msra.mxu0 0.0
      %536 = vmatprep.subr.mxu0 0.0
      %537 = vmatpush1.msra.mxu0 0.0
      %538 = vmatprep.subr.mxu0 0.0
      %539 = vmatpush1.msra.mxu0 0.0
      %540 = vmatprep.subr.mxu0 0.0
      %541 = vmatpush1.msra.mxu0 0.0
      %542 = vmatprep.subr.mxu0 0.0
      %543 = vmatpush1.msra.mxu0 0.0
      %544 = vmatprep.subr.mxu0 0.0
      %545 = vmatpush1.msra.mxu0 0.0
      %546 = vmatprep.subr.mxu0 0.0
      %547 = vmatpush1.msra.mxu0 0.0
      %548 = vmatprep.mubr.f32.mxu0 0.0
      %549 = vmatmul.mubr.f32.gmra.mrb[0].mxu0 %v458
      %v550 = vpop.f32.mrb[0].mxu0
      %v551 = vadd.f32 0.0, %v550
      %v552 = vpop.f32.mrb[0].mxu0
      %553 = vdwg.mxu0
      %554 = vmatprep.subr.mxu0 0.0
      %555 = vmatpush1.msra.mxu0 %v462
      %556 = vmatprep.subr.mxu0 0.0
      %557 = vmatpush1.msra.mxu0 %v462
      %558 = vmatprep.subr.mxu0 0.0
      %559 = vmatpush1.msra.mxu0 %v465
      %560 = vmatprep.subr.mxu0 0.0
      %561 = vmatpush1.msra.mxu0 %v465
      %562 = vmatprep.subr.mxu0 0.0
      %563 = vmatpush1.msra.mxu0 %v468
      %564 = vmatprep.subr.mxu0 0.0
      %565 = vmatpush1.msra.mxu0 %v468
      %566 = vmatprep.subr.mxu0 0.0
      %567 = vmatpush1.msra.mxu0 %v471
      %568 = vmatprep.subr.mxu0 0.0
      %569 = vmatpush1.msra.mxu0 %v471
      %570 = vmatprep.subr.mxu0 0.0
      %571 = vmatpush1.msra.mxu0 %v474
      %572 = vmatprep.subr.mxu0 0.0
      %573 = vmatpush1.msra.mxu0 %v474
      %574 = vmatprep.subr.mxu0 0.0
      %575 = vmatpush1.msra.mxu0 %v477
      %576 = vmatprep.subr.mxu0 0.0
      %577 = vmatpush1.msra.mxu0 %v477
      %578 = vmatprep.subr.mxu0 0.0
      %579 = vmatpush1.msra.mxu0 %v480
      %580 = vmatprep.subr.mxu0 0.0
      %581 = vmatpush1.msra.mxu0 %v480
      %582 = vmatprep.subr.mxu0 0.0
      %583 = vmatpush1.msra.mxu0 %v483
      %584 = vmatprep.subr.mxu0 0.0
      %585 = vmatpush1.msra.mxu0 %v483
      %586 = vmatprep.subr.mxu0 0.0
      %587 = vmatpush1.msra.mxu0 0.0
      %588 = vmatprep.subr.mxu0 0.0
      %589 = vmatpush1.msra.mxu0 0.0
      %590 = vmatprep.subr.mxu0 0.0
      %591 = vmatpush1.msra.mxu0 0.0
      %592 = vmatprep.subr.mxu0 0.0
      %593 = vmatpush1.msra.mxu0 0.0
      %594 = vmatprep.subr.mxu0 0.0
      %595 = vmatpush1.msra.mxu0 0.0
      %596 = vmatprep.subr.mxu0 0.0
      %597 = vmatpush1.msra.mxu0 0.0
      %598 = vmatprep.subr.mxu0 0.0
      %599 = vmatpush1.msra.mxu0 0.0
      %600 = vmatprep.subr.mxu0 0.0
      %601 = vmatpush1.msra.mxu0 0.0
      %602 = vmatprep.subr.mxu0 0.0
      %603 = vmatpush1.msra.mxu0 0.0
      %604 = vmatprep.subr.mxu0 0.0
      %605 = vmatpush1.msra.mxu0 0.0
      %606 = vmatprep.subr.mxu0 0.0
      %607 = vmatpush1.msra.mxu0 0.0
      %608 = vmatprep.subr.mxu0 0.0
      %609 = vmatpush1.msra.mxu0 0.0
      %610 = vmatprep.subr.mxu0 0.0
      %611 = vmatpush1.msra.mxu0 0.0
      %612 = vmatprep.subr.mxu0 0.0
      %613 = vmatpush1.msra.mxu0 0.0
      %614 = vmatprep.subr.mxu0 0.0
      %615 = vmatpush1.msra.mxu0 0.0
      %616 = vmatprep.subr.mxu0 0.0
      %617 = vmatpush1.msra.mxu0 0.0
      %618 = vmatprep.mubr.f32.mxu0 0.0
      %619 = vmatmul.mubr.f32.gmra.mrb[0].mxu0 %v455
      %v620 = vpop.f32.mrb[0].mxu0
      %v621 = vadd.f32 0.0, %v620
      %v622 = vpop.f32.mrb[0].mxu0
      %623 = vdwg.mxu0
      %624 = vmatprep.subr.mxu0 0.0
      %625 = vmatpush1.msra.mxu0 %v462
      %626 = vmatprep.subr.mxu0 0.0
      %627 = vmatpush1.msra.mxu0 %v462
      %628 = vmatprep.subr.mxu0 0.0
      %629 = vmatpush1.msra.mxu0 %v465
      %630 = vmatprep.subr.mxu0 0.0
      %631 = vmatpush1.msra.mxu0 %v465
      %632 = vmatprep.subr.mxu0 0.0
      %633 = vmatpush1.msra.mxu0 %v468
      %634 = vmatprep.subr.mxu0 0.0
      %635 = vmatpush1.msra.mxu0 %v468
      %636 = vmatprep.subr.mxu0 0.0
      %637 = vmatpush1.msra.mxu0 %v471
      %638 = vmatprep.subr.mxu0 0.0
      %639 = vmatpush1.msra.mxu0 %v471
      %640 = vmatprep.subr.mxu0 0.0
      %641 = vmatpush1.msra.mxu0 %v474
      %642 = vmatprep.subr.mxu0 0.0
      %643 = vmatpush1.msra.mxu0 %v474
      %644 = vmatprep.subr.mxu0 0.0
      %645 = vmatpush1.msra.mxu0 %v477
      %646 = vmatprep.subr.mxu0 0.0
      %647 = vmatpush1.msra.mxu0 %v477
      %648 = vmatprep.subr.mxu0 0.0
      %649 = vmatpush1.msra.mxu0 %v480
      %650 = vmatprep.subr.mxu0 0.0
      %651 = vmatpush1.msra.mxu0 %v480
      %652 = vmatprep.subr.mxu0 0.0
      %653 = vmatpush1.msra.mxu0 %v483
      %654 = vmatprep.subr.mxu0 0.0
      %655 = vmatpush1.msra.mxu0 %v483
      %656 = vmatprep.subr.mxu0 0.0
      %657 = vmatpush1.msra.mxu0 0.0
      %658 = vmatprep.subr.mxu0 0.0
      %659 = vmatpush1.msra.mxu0 0.0
      %660 = vmatprep.subr.mxu0 0.0
      %661 = vmatpush1.msra.mxu0 0.0
      %662 = vmatprep.subr.mxu0 0.0
      %663 = vmatpush1.msra.mxu0 0.0
      %664 = vmatprep.subr.mxu0 0.0
      %665 = vmatpush1.msra.mxu0 0.0
      %666 = vmatprep.subr.mxu0 0.0
      %667 = vmatpush1.msra.mxu0 0.0
      %668 = vmatprep.subr.mxu0 0.0
      %669 = vmatpush1.msra.mxu0 0.0
      %670 = vmatprep.subr.mxu0 0.0
      %671 = vmatpush1.msra.mxu0 0.0
      %672 = vmatprep.subr.mxu0 0.0
      %673 = vmatpush1.msra.mxu0 0.0
      %674 = vmatprep.subr.mxu0 0.0
      %675 = vmatpush1.msra.mxu0 0.0
      %676 = vmatprep.subr.mxu0 0.0
      %677 = vmatpush1.msra.mxu0 0.0
      %678 = vmatprep.subr.mxu0 0.0
      %679 = vmatpush1.msra.mxu0 0.0
      %680 = vmatprep.subr.mxu0 0.0
      %681 = vmatpush1.msra.mxu0 0.0
      %682 = vmatprep.subr.mxu0 0.0
      %683 = vmatpush1.msra.mxu0 0.0
      %684 = vmatprep.subr.mxu0 0.0
      %685 = vmatpush1.msra.mxu0 0.0
      %686 = vmatprep.subr.mxu0 0.0
      %687 = vmatpush1.msra.mxu0 0.0
      %688 = vmatprep.mubr.f32.mxu0 0.0
      %689 = vmatmul.mubr.f32.gmra.mrb[0].mxu0 %v459
      %v690 = vpop.f32.mrb[0].mxu0
      %v691 = vadd.f32 0.0, %v690
      %v692 = vpop.f32.mrb[0].mxu0
      %693 = vdwg.mxu0
      %v694 = vlog2.pop %v551
      %v695 = vmul.f32 %v694, 0.6931472
      %v696 = vadd.f32 %v695, %v452
      %v697 = vrcp.pop %v621
      %v698 = vmul.f32 %v691, %v697
      %v699 = vsub.f32 %v696, %v698
      %v700 = vmul.f32 %v337, %v699
      %vm701 = vcmask 64512
      %v702 = vsel %vm701, %v700, 0.0
      %703 = vadd.xlane.f32.xlu0 %v702
      %v704 = vpop.xlane.xlu0 %703
      %v705 = vrot.slane %v704, 4
      %v706 = vadd.f32 %v704, %v705
      %v707 = vrot.slane %v706, 2
      %v708 = vadd.f32 %v706, %v707
      %v709 = vrot.slane %v708, 1
      %v710 = vadd.f32 %v708, %v709
      %vm711 = vcmask 0
      %712 = vst.msk [vmem:[%s163] sm:$0x1] %vm711, %v710
      %p713 = scmp.lt.s32.totalorder %s13, 1
      %s714 = scalar_select %p713, %s13, 1
      %s715 = scalar_lea.vmem %s2, %s714
      // Predicated region
      $region29: #{time_decay_loss.1} parent=27 // pred_check
        %p716 = pneg %p83
      $region30: #{time_decay_loss.1} parent=27 // pred_check_branch
        %718 = sbr.rel (%p716) target = $region32
      $region31: #{time_decay_loss.1} parent=27 // pred_region
        _
      $region32: #{time_decay_loss.1} parent=27 // pred_fallthru
        _
    $region28: #{time_decay_loss.1} parent=5 // pred_fallthru
      _
    %p719 = scmp.le.s32.totalorder 2, %s8
    // Predicated region
    $region33: #{time_decay_loss.1} parent=5 // pred_check
      %p720 = pneg %p719
    $region34: #{time_decay_loss.1} parent=5 // pred_check_branch
      %722 = sbr.rel (%p720) target = $region36
    $region35: #{time_decay_loss.1} parent=5 // pred_region
      %s723 = ssub.s32 %s8, 2
      // Predicated region
      $region37: #{time_decay_loss.1} parent=35 // pred_check
        %p724 = pneg %p89
      $region38: #{time_decay_loss.1} parent=35 // pred_check_branch
        %726 = sbr.rel (%p724) target = $region40
      $region39: #{time_decay_loss.1} parent=35 // pred_region
        %p727 = scmp.lt.s32.totalorder %s14, 1
        %s728 = scalar_select %p727, %s14, 1
        %s729 = scalar_lea.vmem %s2, %s728
      $region40: #{time_decay_loss.1} parent=35 // pred_fallthru
        _
    $region36: #{time_decay_loss.1} parent=5 // pred_fallthru
      _
  $region6: #{time_decay_loss.1} parent=0 // loop_footer
    %s12 = sadd.s32 1, %s8
  $region7: #{time_decay_loss.1} parent=0 // loop_footer_branch
    %7 = sbr.rel target = $region3
  $region8: #{time_decay_loss.1} parent=0 // loop_exit
    _

</llo_original>
